<compile_context>
chip_gen: v6e
topology: v6e:2x2x1
jax: 0.10.0
libtpu: 0.0.40
codegen_flags: <defaults>
</compile_context>

<pallas_src>
import functools
import math

import jax
import jax.numpy as jnp
from jax.experimental import pallas as pl
from jax.experimental.pallas import tpu as pltpu


def _round_up(v, m):
    return ((v + m - 1) // m) * m


def _linear_average_kernel(x_ref, memT_ref, out_ref, *, inv_t):
    """One-shot (tm, K) x (K, tn) MXU matmul scaled by the static 1/T."""
    out_ref[...] = (
        jnp.dot(x_ref[...], memT_ref[...], preferred_element_type=jnp.float32)
        * inv_t
    ).astype(out_ref.dtype)


def linear_average_forward(x, memT_padded, T, out_size, *, tn, tm_cap=256):
    """out = (x @ memory.T) / T with the bank pre-transposed/padded to (K_pad, N_pad)."""
    batch, in_size = x.shape
    k_pad, n_pad = memT_padded.shape
    assert in_size <= k_pad
    assert n_pad % tn == 0

    # Only the small activation tensor gets padded per call (bank is pre-padded once).
    pm = _round_up(max(batch, 1), 8)
    tm = pm if pm <= tm_cap else tm_cap
    pm = _round_up(pm, tm)
    x_p = jnp.zeros((pm, k_pad), jnp.float32).at[:batch, :in_size].set(
        x.astype(jnp.float32)
    )

    grid = (pm // tm, n_pad // tn)
    kernel = functools.partial(_linear_average_kernel, inv_t=1.0 / float(T))

    out_p = pl.pallas_call(
        kernel,
        out_shape=jax.ShapeDtypeStruct((pm, n_pad), jnp.float32),
        grid_spec=pltpu.PrefetchScalarGridSpec(
            num_scalar_prefetch=0,
            grid=grid,
            in_specs=[
                pl.BlockSpec((tm, k_pad), lambda i, j: (i, 0)),   # activations
                pl.BlockSpec((k_pad, tn), lambda i, j: (0, j)),   # K-major bank tile
            ],
            out_specs=pl.BlockSpec((tm, tn), lambda i, j: (i, j)),
        ),
        compiler_params=pltpu.CompilerParams(
            # Both axes independent; the N axis carries the bank stream and shards
            # across TensorCores on megacore / v7x parts.
            dimension_semantics=("parallel", "parallel"),
        ),
    )(x_p, memT_padded)

    return out_p[:batch, :out_size]


class LinearAverage:
    """JAX/Pallas re-implementation of the PyTorch LinearAverage module (forward)."""

    def __init__(self, inputSize, outputSize, T=0.05, momentum=0.5, *, key=None,
                 tn=512, mem_dtype=jnp.float32):
        self.T = float(T)
        self.momentum = float(momentum)
        self.nLem = outputSize
        self.inputSize = inputSize
        self.outputSize = outputSize

        stdv = 1.0 / math.sqrt(inputSize / 3)
        if key is None:
            key = jax.random.PRNGKey(0)
        # torch.rand(..).mul_(2*stdv).add_(-stdv)  ==  U(-stdv, stdv)
        self.memory = jax.random.uniform(
            key, (outputSize, inputSize), dtype=jnp.float32,
            minval=-stdv, maxval=stdv,
        )

        # Pre-transpose + zero-pad the bank ONCE into a K-major (K_pad, N_pad) layout:
        # each RHS tile then streams straight into the MXU with no per-call padding
        # copy and no per-tile transpose.
        k_pad = _round_up(inputSize, 128)
        n_lane = _round_up(outputSize, 128)
        if n_lane <= tn:
            self._tn = n_lane
            n_pad = n_lane
        else:
            self._tn = _round_up(tn, 128)
            n_pad = _round_up(n_lane, self._tn)
        # Optionally set mem_dtype=jnp.bfloat16 to halve streamed bytes (accuracy sign-off needed).
        self._memT = (
            jnp.zeros((k_pad, n_pad), mem_dtype)
            .at[:inputSize, :outputSize]
            .set(self.memory.T.astype(mem_dtype))
        )

    def __call__(self, x, y=None):
        # `y` only matters for the backward memory-bank momentum update; forward ignores it.
        # TODO(synk): memory-bank momentum update lives in backward, not implemented here.
        return linear_average_forward(
            x, self._memT, self.T, self.outputSize, tn=self._tn
        )


if __name__ == "__main__":
    key = jax.random.PRNGKey(0)
    k_mem, k_x, k_y = jax.random.split(key, 3)

    batch, input_size, output_size = 8, 128, 256
    module = LinearAverage(input_size, output_size, T=0.05, momentum=0.5, key=k_mem)

    x = jax.random.normal(k_x, (batch, input_size), dtype=jnp.float32)
    y = jax.random.randint(k_y, (batch,), 0, output_size, dtype=jnp.int32)

    out = module(x, y)
    out = jax.block_until_ready(out)

    # Reference check in plain JAX against the original (unpadded, f32) bank.
    ref = (x @ module.memory.T) / module.T
    assert out.shape == (batch, output_size)
    assert jnp.allclose(out, ref, atol=1e-4, rtol=1e-4), "mismatch vs reference"

    print("KERNEL_OK")
</pallas_src>

<mosaic_0001>
module attributes {stable_mosaic.version = 11 : i64} {
  func.func @_linear_average_kernel(%arg0: i32, %arg1: i32, %arg2: memref<8x128xf32, #tpu.memory_space<vmem>>, %arg3: memref<128x256xf32, #tpu.memory_space<vmem>>, %arg4: memref<8x256xf32, #tpu.memory_space<vmem>>) attributes {dimension_semantics = [#tpu.dimension_semantics<parallel>, #tpu.dimension_semantics<parallel>], iteration_bounds = array<i64: 1, 1>, scalar_prefetch = 0 : i64, scratch_operands = 0 : i64, tpu.core_type = #tpu.core_type<tc>, window_params = [{transform_indices = @transform_0, window_bounds = array<i64: 8, 128>}, {transform_indices = @transform_1, window_bounds = array<i64: 128, 256>}, {transform_indices = @transform_2, window_bounds = array<i64: 8, 256>}]} {
    %c0 = arith.constant 0 : index
    %c0_0 = arith.constant 0 : index
    %0 = vector.load %arg2[%c0, %c0_0] : memref<8x128xf32, #tpu.memory_space<vmem>>, vector<8x128xf32>
    %c0_1 = arith.constant 0 : index
    %c0_2 = arith.constant 0 : index
    %1 = vector.load %arg3[%c0_1, %c0_2] : memref<128x256xf32, #tpu.memory_space<vmem>>, vector<128x256xf32>
    %cst = arith.constant dense<0.000000e+00> : vector<8x256xf32>
    %2 = tpu.matmul %0, %1, %cst {dimension_numbers = #tpu.dot_dimension_numbers<[1], [0], [0], [1], [0, 0, 1, 1], [], []>} : vector<8x128xf32>, vector<128x256xf32>, vector<8x256xf32> -> vector<8x256xf32>
    %cst_3 = arith.constant 2.000000e+01 : f32
    %3 = vector.broadcast %cst_3 : f32 to vector<8x256xf32>
    %4 = arith.mulf %2, %3 : vector<8x256xf32>
    %c0_4 = arith.constant 0 : index
    %c0_5 = arith.constant 0 : index
    %5 = vector.load %arg4[%c0_4, %c0_5] : memref<8x256xf32, #tpu.memory_space<vmem>>, vector<8x256xf32>
    tpu.vector_store %arg4[%c0_4, %c0_5], %4 {strides = array<i32>} : memref<8x256xf32, #tpu.memory_space<vmem>>, vector<8x256xf32>,
    return
  }
  func.func @transform_0(%arg0: i32, %arg1: i32) -> (i32, i32) {
    %c0_i32 = arith.constant 0 : i32
    %c0_i32_0 = arith.constant 0 : i32
    return %arg0, %c0_i32 : i32, i32
  }
  func.func @transform_1(%arg0: i32, %arg1: i32) -> (i32, i32) {
    %c0_i32 = arith.constant 0 : i32
    %c0_i32_0 = arith.constant 0 : i32
    return %c0_i32, %arg1 : i32, i32
  }
  func.func @transform_2(%arg0: i32, %arg1: i32) -> (i32, i32) {
    %c0_i32 = arith.constant 0 : i32
    return %arg0, %arg1 : i32, i32
  }
}

</mosaic_0001>

<llo_original>
// kernel: tpu_custom_call.1
$region0: #{tpu_custom_call.1}
  #allocation0 [shape = 'u32[]', space=smem, size = 0x4, offset = 0x4, fixed_abs, tag = 'smem constant byte address 0x4 - core index']
  #allocation1 [shape = 'u32[144,128]{1,0:T(1,128)}', space=vmem, size = 0x12000, scoped, tag = 'internal scratch']
  %s0 = inlined_call_operand.hbm [shape: f32[8,128], index: 0, kind: input, shape index: {}]
  %s1 = inlined_call_operand.hbm [shape: f32[128,256], index: 1, kind: input, shape index: {}]
  %s2 = inlined_call_operand.hbm [shape: f32[8,256], index: 2, kind: output, shape index: {}]
  %s3 = sld [smem:[#allocation0]]
  $region26: #{tpu_custom_call.1} parent=0
    _
  %s5 = ssub.s32 1, %s3
  %s6 = scalar_select 0, %s5, %s3
  $region1: #{tpu_custom_call.1} parent=0
    #allocation2 [shape = 'u8[4096]{0}', space=vmem, size = 0x1000, scoped, tag = 'input window, operand 0, single buffered']
    #allocation3 [shape = 's32[1]{0}', space=sflag, size = 0x4, scoped, tag = 'scoped memory for tpu_custom_call.1']
    #allocation4 [shape = 's32[1]{0}', space=sflag, size = 0x4, scoped, tag = 'scoped memory for tpu_custom_call.1']
    #allocation5 [shape = 'u8[131072]{0}', space=vmem, size = 0x20000, scoped, tag = 'input window, operand 1, single buffered']
    #allocation6 [shape = 's32[1]{0}', space=sflag, size = 0x4, scoped, tag = 'scoped memory for tpu_custom_call.1']
    #allocation7 [shape = 'u8[8192]{0}', space=vmem, size = 0x2000, scoped, tag = 'output window, operand 0, single buffered']
    %7 = vsyncpa [#allocation3], 0
    %8 = vsyncpa [#allocation6], 0
    %9 = vsyncpa [#allocation4], 0
    // Predicated region
    $region2: #{tpu_custom_call.1} parent=1 // pred_check
      _
    $region3: #{tpu_custom_call.1} parent=1 // pred_check_branch
      %11 = sbr.rel (0) target = $region5
    $region4: #{tpu_custom_call.1} parent=1 // pred_region
      %s13 = ssub.s32 128, 128
      %14 = vsyncadd [#allocation3], %s13
      %s16 = sshll.u32 [#allocation2], 4
      %s17 = int_to_ptr.vmem [resolvable:$true] %s16
      %19 = dma.hbm_to_vmem [thread:$0]  %s0, 128, %s17, [#allocation3]
    $region5: #{tpu_custom_call.1} parent=1 // pred_fallthru
      _
    // Predicated region
    $region6: #{tpu_custom_call.1} parent=1 // pred_check
      _
    $region7: #{tpu_custom_call.1} parent=1 // pred_check_branch
      %21 = sbr.rel (0) target = $region9
    $region8: #{tpu_custom_call.1} parent=1 // pred_region
      %s23 = ssub.s32 4096, 4096
      %24 = vsyncadd [#allocation6], %s23
      %s25 = sshll.u32 [#allocation5], 4
      %s26 = int_to_ptr.vmem [resolvable:$true] %s25
      %31 = dma.hbm_to_vmem [thread:$0]  %s1, 4096, %s26, [#allocation6], 256, 256, 16
    $region9: #{tpu_custom_call.1} parent=1 // pred_fallthru
      _
    // Predicated region
    $region10: #{tpu_custom_call.1} parent=1 // pred_check
      _
    $region11: #{tpu_custom_call.1} parent=1 // pred_check_branch
      %33 = sbr.rel (0) target = $region13
    $region12: #{tpu_custom_call.1} parent=1 // pred_region
      %34 = dma.done [#allocation3], 128
    $region13: #{tpu_custom_call.1} parent=1 // pred_fallthru
      _
    // Predicated region
    $region14: #{tpu_custom_call.1} parent=1 // pred_check
      _
    $region15: #{tpu_custom_call.1} parent=1 // pred_check_branch
      %36 = sbr.rel (0) target = $region17
    $region16: #{tpu_custom_call.1} parent=1 // pred_region
      %37 = dma.done [#allocation6], 4096
    $region17: #{tpu_custom_call.1} parent=1 // pred_fallthru
      _
    %v38 = vld [vmem:[#allocation2] sm:$0xff]
    %v39 = vld [vmem:[#allocation5] sm:$0xff]
    %v40 = vld [vmem:[#allocation5 + $0x8] sm:$0xff]
    %v41 = vld [vmem:[#allocation5 + $0x10] sm:$0xff]
    %v42 = vld [vmem:[#allocation5 + $0x18] sm:$0xff]
    %v43 = vld [vmem:[#allocation5 + $0x20] sm:$0xff]
    %v44 = vld [vmem:[#allocation5 + $0x28] sm:$0xff]
    %v45 = vld [vmem:[#allocation5 + $0x30] sm:$0xff]
    %v46 = vld [vmem:[#allocation5 + $0x38] sm:$0xff]
    %v47 = vld [vmem:[#allocation5 + $0x40] sm:$0xff]
    %v48 = vld [vmem:[#allocation5 + $0x48] sm:$0xff]
    %v49 = vld [vmem:[#allocation5 + $0x50] sm:$0xff]
    %v50 = vld [vmem:[#allocation5 + $0x58] sm:$0xff]
    %v51 = vld [vmem:[#allocation5 + $0x60] sm:$0xff]
    %v52 = vld [vmem:[#allocation5 + $0x68] sm:$0xff]
    %v53 = vld [vmem:[#allocation5 + $0x70] sm:$0xff]
    %v54 = vld [vmem:[#allocation5 + $0x78] sm:$0xff]
    %v55 = vld [vmem:[#allocation5 + $0x80] sm:$0xff]
    %v56 = vld [vmem:[#allocation5 + $0x88] sm:$0xff]
    %v57 = vld [vmem:[#allocation5 + $0x90] sm:$0xff]
    %v58 = vld [vmem:[#allocation5 + $0x98] sm:$0xff]
    %v59 = vld [vmem:[#allocation5 + $0xa0] sm:$0xff]
    %v60 = vld [vmem:[#allocation5 + $0xa8] sm:$0xff]
    %v61 = vld [vmem:[#allocation5 + $0xb0] sm:$0xff]
    %v62 = vld [vmem:[#allocation5 + $0xb8] sm:$0xff]
    %v63 = vld [vmem:[#allocation5 + $0xc0] sm:$0xff]
    %v64 = vld [vmem:[#allocation5 + $0xc8] sm:$0xff]
    %v65 = vld [vmem:[#allocation5 + $0xd0] sm:$0xff]
    %v66 = vld [vmem:[#allocation5 + $0xd8] sm:$0xff]
    %v67 = vld [vmem:[#allocation5 + $0xe0] sm:$0xff]
    %v68 = vld [vmem:[#allocation5 + $0xe8] sm:$0xff]
    %v69 = vld [vmem:[#allocation5 + $0xf0] sm:$0xff]
    %v70 = vld [vmem:[#allocation5 + $0xf8] sm:$0xff]
    %71 = vmatprep.subr.mxu0 %v70
    %72 = vmatpush1.msra.mxu0 %v69
    %73 = vmatprep.subr.mxu0 %v68
    %74 = vmatpush1.msra.mxu0 %v67
    %75 = vmatprep.subr.mxu0 %v66
    %76 = vmatpush1.msra.mxu0 %v65
    %77 = vmatprep.subr.mxu0 %v64
    %78 = vmatpush1.msra.mxu0 %v63
    %79 = vmatprep.subr.mxu0 %v62
    %80 = vmatpush1.msra.mxu0 %v61
    %81 = vmatprep.subr.mxu0 %v60
    %82 = vmatpush1.msra.mxu0 %v59
    %83 = vmatprep.subr.mxu0 %v58
    %84 = vmatpush1.msra.mxu0 %v57
    %85 = vmatprep.subr.mxu0 %v56
    %86 = vmatpush1.msra.mxu0 %v55
    %87 = vmatprep.subr.mxu0 %v54
    %88 = vmatpush1.msra.mxu0 %v53
    %89 = vmatprep.subr.mxu0 %v52
    %90 = vmatpush1.msra.mxu0 %v51
    %91 = vmatprep.subr.mxu0 %v50
    %92 = vmatpush1.msra.mxu0 %v49
    %93 = vmatprep.subr.mxu0 %v48
    %94 = vmatpush1.msra.mxu0 %v47
    %95 = vmatprep.subr.mxu0 %v46
    %96 = vmatpush1.msra.mxu0 %v45
    %97 = vmatprep.subr.mxu0 %v44
    %98 = vmatpush1.msra.mxu0 %v43
    %99 = vmatprep.subr.mxu0 %v42
    %100 = vmatpush1.msra.mxu0 %v41
    %101 = vmatprep.subr.mxu0 %v40
    %102 = vmatpush1.msra.mxu0 %v39
    %103 = vmatprep.subr.mxu0 0.0
    %104 = vmatpush2.msra.mxu0 0.0
    %105 = vmatprep.subr.mxu0 0.0
    %106 = vmatpush2.msra.mxu0 0.0
    %107 = vmatprep.subr.mxu0 0.0
    %108 = vmatpush2.msra.mxu0 0.0
    %109 = vmatprep.subr.mxu0 0.0
    %110 = vmatpush2.msra.mxu0 0.0
    %111 = vmatprep.subr.mxu0 0.0
    %112 = vmatpush2.msra.mxu0 0.0
    %113 = vmatprep.subr.mxu0 0.0
    %114 = vmatpush2.msra.mxu0 0.0
    %115 = vmatprep.subr.mxu0 0.0
    %116 = vmatpush2.msra.mxu0 0.0
    %117 = vmatprep.subr.mxu0 0.0
    %118 = vmatpush2.msra.mxu0 0.0
    %119 = vmatprep.subr.mxu0 0.0
    %120 = vmatpush2.msra.mxu0 0.0
    %121 = vmatprep.subr.mxu0 0.0
    %122 = vmatpush2.msra.mxu0 0.0
    %123 = vmatprep.subr.mxu0 0.0
    %124 = vmatpush2.msra.mxu0 0.0
    %125 = vmatprep.subr.mxu0 0.0
    %126 = vmatpush2.msra.mxu0 0.0
    %127 = vmatprep.subr.mxu0 0.0
    %128 = vmatpush2.msra.mxu0 0.0
    %129 = vmatprep.subr.mxu0 0.0
    %130 = vmatpush2.msra.mxu0 0.0
    %131 = vmatprep.subr.mxu0 0.0
    %132 = vmatpush2.msra.mxu0 0.0
    %133 = vmatprep.subr.mxu0 0.0
    %134 = vmatpush2.msra.mxu0 0.0
    %135 = vmatprep.mubr.f32.mxu0 0.0
    %136 = vmatmul.mubr.f32.gmra.mxu0 %v38
    %v137 = vpop.f32.mrf.mxu0
    %v138 = vadd.f32 0.0, %v137
    %v139 = vpop.f32.mrf.mxu0
    %v140 = vadd.f32 0.0, %v139
    %141 = vdwg.mxu0
    %v142 = vmul.f32 %v138, 20.0
    %v143 = vmul.f32 %v140, 20.0
    %144 = vst [vmem:[#allocation7] sm:$0xff] %v142
    %145 = vst [vmem:[#allocation7 + $0x8] sm:$0xff] %v143
    // Predicated region
    $region18: #{tpu_custom_call.1} parent=1 // pred_check
      _
    $region19: #{tpu_custom_call.1} parent=1 // pred_check_branch
      %147 = sbr.rel (0) target = $region21
    $region20: #{tpu_custom_call.1} parent=1 // pred_region
      %s149 = ssub.s32 256, 256
      %150 = vsyncadd [#allocation4], %s149
      %s152 = sshll.u32 [#allocation7], 4
      %s153 = int_to_ptr.vmem [resolvable:$true] %s152
      %155 = dma.vmem_to_hbm [thread:$0]  %s153, 256, %s2, [#allocation4]
    $region21: #{tpu_custom_call.1} parent=1 // pred_fallthru
      _
    // Predicated region
    $region22: #{tpu_custom_call.1} parent=1 // pred_check
      _
    $region23: #{tpu_custom_call.1} parent=1 // pred_check_branch
      %157 = sbr.rel (0) target = $region25
    $region24: #{tpu_custom_call.1} parent=1 // pred_region
      %158 = dma.done [#allocation4], 256
    $region25: #{tpu_custom_call.1} parent=1 // pred_fallthru
      _
    %159 = vsyncpa [#allocation3], 1
    %160 = vsyncpa [#allocation6], 1
    %161 = vsyncpa [#allocation4], 1

</llo_original>
